<compile_context>
chip_gen: v7x
topology: tpu7x:2x2x1
jax: 0.10.0
libtpu: 0.0.40
codegen_flags: <defaults>
</compile_context>

<pallas_src>
import jax
import jax.numpy as jnp
from jax.experimental import pallas as pl
from jax.experimental.pallas import tpu as pltpu

BN_EPS = 1e-5
NEG_INF = -1e30

D_IN = 28 * 28                   # 784 (kept unpadded: full-extent K block)
H1, H1_P = 200, 256
H2, H2_P = 150, 256
H3, H3_P = 100, 128
NUM_CLASSES, C_P = 10, 128


def _round_up(n, m):
    return ((n + m - 1) // m) * m


# --------------------------------------------------------------------------
# Kernel: 4 x (bf16 matmul, f32 accumulate) + bias + relu, then log_softmax.
# The padded logit columns (10..127) carry NEG_INF via the baked fc4 bias, so
# no explicit masking is needed before the log-sum-exp.
# --------------------------------------------------------------------------
def mlp_kernel(x_ref,
               w1_ref, b1_ref,
               w2_ref, b2_ref,
               w3_ref, b3_ref,
               w4_ref, b4_ref,
               o_ref):
    x = x_ref[...]                                            # (TB, 784) bf16

    h = jnp.dot(x, w1_ref[...], preferred_element_type=jnp.float32) + b1_ref[...]
    h = jnp.maximum(h, 0.0)                                   # fc1+bn1 -> relu

    h = jnp.dot(h.astype(jnp.bfloat16), w2_ref[...],
                preferred_element_type=jnp.float32) + b2_ref[...]
    h = jnp.maximum(h, 0.0)                                   # fc2+bn2 -> relu

    h = jnp.dot(h.astype(jnp.bfloat16), w3_ref[...],
                preferred_element_type=jnp.float32) + b3_ref[...]
    h = jnp.maximum(h, 0.0)                                   # fc3+bn3 -> relu

    z = jnp.dot(h.astype(jnp.bfloat16), w4_ref[...],
                preferred_element_type=jnp.float32) + b4_ref[...]   # fc4

    # Padded class columns already hold NEG_INF (baked into b4), so they
    # contribute exp(-1e30 - max) == 0 to the log-sum-exp.
    z_max = jnp.max(z, axis=-1, keepdims=True)
    z_sh = z - z_max
    lse = jnp.log(jnp.sum(jnp.exp(z_sh), axis=-1, keepdims=True))
    o_ref[...] = (z_sh - lse)[:, :NUM_CLASSES]                # (TB, 10)


# --------------------------------------------------------------------------
# Param folding / packing (BN fold, lane padding, bf16 weight cast).
# --------------------------------------------------------------------------
def fold_and_pack_params(p):
    def fold(w, b, g, be, m, v):
        scale = g / jnp.sqrt(v + BN_EPS)                 # (1, out)
        return w * scale, (b - m) * scale + be

    def pad2(a, rows, cols, value=0.0):
        return jnp.pad(a, ((0, rows - a.shape[0]), (0, cols - a.shape[1])),
                       constant_values=value)

    w1, b1 = fold(p["w1"], p["b1"], p["g1"], p["be1"], p["m1"], p["v1"])
    w2, b2 = fold(p["w2"], p["b2"], p["g2"], p["be2"], p["m2"], p["v2"])
    w3, b3 = fold(p["w3"], p["b3"], p["g3"], p["be3"], p["m3"], p["v3"])
    w4, b4 = p["w4"], p["b4"]

    return {
        # w1 keeps its true K extent (784); only the output dims are padded.
        "w1": pad2(w1, D_IN, H1_P).astype(jnp.bfloat16),
        "b1": pad2(b1, 1, H1_P).astype(jnp.float32),
        "w2": pad2(w2, H1_P, H2_P).astype(jnp.bfloat16),
        "b2": pad2(b2, 1, H2_P).astype(jnp.float32),
        "w3": pad2(w3, H2_P, H3_P).astype(jnp.bfloat16),
        "b3": pad2(b3, 1, H3_P).astype(jnp.float32),
        "w4": pad2(w4, H3_P, C_P).astype(jnp.bfloat16),
        # Class mask baked in: padded logit columns get NEG_INF (w4 padded
        # columns are zero, so z_pad == NEG_INF automatically).
        "b4": pad2(b4, 1, C_P, value=NEG_INF).astype(jnp.float32),
    }


# --------------------------------------------------------------------------
# Wrapper: batch-tiled pallas_call.
# --------------------------------------------------------------------------
@jax.jit
def net_forward(x_nchw, packed):
    """x_nchw: (B, 1, 28, 28) float/bf16 -> (B, 10) log-probabilities."""
    b = x_nchw.shape[0]
    x = x_nchw.reshape(b, D_IN)                       # same as x.view(-1, 784)
    if x.dtype != jnp.bfloat16:
        # Ship x over HBM as bf16 (halves the dominant DMA stream).  For f32
        # callers this is one fused convert pass; feed bf16 at the source to
        # avoid even that (numerically identical: the matmul is bf16 anyway).
        x = x.astype(jnp.bfloat16)

    # Batch tiling: multiples of 16 rows (bf16 sublane packing), up to 512
    # rows per step; keep >= 2 grid steps at real batch sizes so the parallel
    # batch axis can shard across v7x's two TensorCores (harmless on v5e/v6e).
    b16 = _round_up(b, 16)
    tb = min(512, b16)
    if b16 >= 64:
        tb = min(tb, _round_up(-(-b16 // 2), 16))
    b_pad = _round_up(b16, tb)
    if b_pad != b:
        x = jnp.pad(x, ((0, b_pad - b), (0, 0)))

    grid = (b_pad // tb,)

    def resident(shape):
        # Constant block index -> weight/bias stays VMEM-resident across steps.
        return pl.BlockSpec(shape, lambda i: (0, 0))

    in_specs = [
        pl.BlockSpec((tb, D_IN), lambda i: (i, 0)),            # x tile (bf16)
        resident((D_IN, H1_P)), resident((1, H1_P)),
        resident((H1_P, H2_P)), resident((1, H2_P)),
        resident((H2_P, H3_P)), resident((1, H3_P)),
        resident((H3_P, C_P)),  resident((1, C_P)),
    ]
    # Lane-narrow output block (full last dim == 10): avoids the 128-wide
    # padded output slab + re-read/slice pass of the previous revision.
    out_specs = pl.BlockSpec((tb, NUM_CLASSES), lambda i: (i, 0))

    out = pl.pallas_call(
        mlp_kernel,
        out_shape=jax.ShapeDtypeStruct((b_pad, NUM_CLASSES), jnp.float32),
        grid_spec=pltpu.PrefetchScalarGridSpec(
            num_scalar_prefetch=0,
            grid=grid,
            in_specs=in_specs,
            out_specs=out_specs,
        ),
        compiler_params=pltpu.CompilerParams(
            dimension_semantics=("parallel",),
            vmem_limit_bytes=32 << 20,
        ),
    )(x,
      packed["w1"], packed["b1"],
      packed["w2"], packed["b2"],
      packed["w3"], packed["b3"],
      packed["w4"], packed["b4"])

    return out[:b] if b_pad != b else out


# --------------------------------------------------------------------------
# Synthetic params + references.
# --------------------------------------------------------------------------
def init_params(key):
    """Deterministic synthetic parameters (shapes from Net.__init__)."""
    dims = [(D_IN, H1), (H1, H2), (H2, H3), (H3, NUM_CLASSES)]
    keys = jax.random.split(key, 16)
    params = {}
    ki = 0
    for layer, (fan_in, fan_out) in enumerate(dims, start=1):
        bound = 1.0 / jnp.sqrt(fan_in)
        # Stored as (in, out) = transpose of PyTorch's (out, in) weight.
        params[f"w{layer}"] = jax.random.uniform(
            keys[ki], (fan_in, fan_out), jnp.float32, -bound, bound); ki += 1
        params[f"b{layer}"] = jax.random.uniform(
            keys[ki], (1, fan_out), jnp.float32, -bound, bound); ki += 1
        if layer <= 3:  # BatchNorm1d params for bn1/bn2/bn3
            params[f"g{layer}"] = 1.0 + 0.1 * jax.random.normal(
                keys[ki], (1, fan_out), jnp.float32); ki += 1
            params[f"be{layer}"] = 0.1 * jax.random.normal(
                keys[ki], (1, fan_out), jnp.float32); ki += 1
            params[f"m{layer}"] = 0.05 * jax.random.normal(
                jax.random.fold_in(keys[ki], 1), (1, fan_out), jnp.float32)
            params[f"v{layer}"] = 1.0 + 0.1 * jax.random.uniform(
                jax.random.fold_in(keys[ki], 2), (1, fan_out), jnp.float32)
    return params


def reference_forward(x_nchw, p):
    """Faithful f32 eval-mode reference (unfused BN)."""
    x = x_nchw.reshape(x_nchw.shape[0], D_IN).astype(jnp.float32)

    def bn_relu(h, g, be, m, v):
        return jnp.maximum((h - m) * g / jnp.sqrt(v + BN_EPS) + be, 0.0)

    h = bn_relu(x @ p["w1"] + p["b1"], p["g1"], p["be1"], p["m1"], p["v1"])
    h = bn_relu(h @ p["w2"] + p["b2"], p["g2"], p["be2"], p["m2"], p["v2"])
    h = bn_relu(h @ p["w3"] + p["b3"], p["g3"], p["be3"], p["m3"], p["v3"])
    z = h @ p["w4"] + p["b4"]
    return jax.nn.log_softmax(z, axis=1)


def reference_forward_bf16(x_nchw, p):
    """Same BN-fold + bf16-weight/activation scheme as the kernel, plain JAX."""
    def fold(w, b, g, be, m, v):
        scale = g / jnp.sqrt(v + BN_EPS)
        return w * scale, (b - m) * scale + be

    layers = [
        fold(p["w1"], p["b1"], p["g1"], p["be1"], p["m1"], p["v1"]),
        fold(p["w2"], p["b2"], p["g2"], p["be2"], p["m2"], p["v2"]),
        fold(p["w3"], p["b3"], p["g3"], p["be3"], p["m3"], p["v3"]),
        (p["w4"], p["b4"]),
    ]
    h = x_nchw.reshape(x_nchw.shape[0], D_IN)
    for li, (w, bias) in enumerate(layers):
        h = jnp.dot(h.astype(jnp.bfloat16), w.astype(jnp.bfloat16),
                    preferred_element_type=jnp.float32) + bias
        if li < 3:
            h = jnp.maximum(h, 0.0)
    return jax.nn.log_softmax(h, axis=1)


if __name__ == "__main__":
    key = jax.random.PRNGKey(0)
    k_x, k_p = jax.random.split(key)

    batch = 8
    x = jax.random.normal(k_x, (batch, 1, 28, 28), jnp.float32)  # NCHW input
    params = init_params(k_p)
    packed = fold_and_pack_params(params)

    out = jax.block_until_ready(net_forward(x, packed))
    assert out.shape == (batch, NUM_CLASSES)

    # Tight check: identical math (BN folded, bf16 weights/activations, f32 acc).
    ref_tight = reference_forward_bf16(x, params)
    assert jnp.allclose(out, ref_tight, atol=2e-3, rtol=2e-3), "mismatch vs bf16 reference"

    # Loose check: faithful f32 module semantics (bf16 quantization error only).
    ref_f32 = reference_forward(x, params)
    assert jnp.allclose(out, ref_f32, atol=5e-2, rtol=5e-2), "mismatch vs f32 reference"

    # log_softmax rows should sum to ~1 in probability space.
    assert jnp.allclose(jnp.sum(jnp.exp(out), axis=1), 1.0, atol=1e-3)

    print("KERNEL_OK")
</pallas_src>

<mosaic_0001>
module attributes {stable_mosaic.version = 11 : i64} {
  func.func @mlp_kernel(%arg0: i32, %arg1: memref<16x784xbf16, #tpu.memory_space<vmem>>, %arg2: memref<784x256xbf16, #tpu.memory_space<vmem>>, %arg3: memref<1x256xf32, #tpu.memory_space<vmem>>, %arg4: memref<256x256xbf16, #tpu.memory_space<vmem>>, %arg5: memref<1x256xf32, #tpu.memory_space<vmem>>, %arg6: memref<256x128xbf16, #tpu.memory_space<vmem>>, %arg7: memref<1x128xf32, #tpu.memory_space<vmem>>, %arg8: memref<128x128xbf16, #tpu.memory_space<vmem>>, %arg9: memref<1x128xf32, #tpu.memory_space<vmem>>, %arg10: memref<16x10xf32, #tpu.memory_space<vmem>>) attributes {dimension_semantics = [#tpu.dimension_semantics<parallel>], iteration_bounds = array<i64: 1>, scalar_prefetch = 0 : i64, scratch_operands = 0 : i64, tpu.core_type = #tpu.core_type<tc>, window_params = [{transform_indices = @transform_0, window_bounds = array<i64: 16, 784>}, {pipeline_mode = #tpu.pipeline_mode<synchronous>, transform_indices = @transform_1, window_bounds = array<i64: 784, 256>}, {pipeline_mode = #tpu.pipeline_mode<synchronous>, transform_indices = @transform_2, window_bounds = array<i64: 1, 256>}, {pipeline_mode = #tpu.pipeline_mode<synchronous>, transform_indices = @transform_3, window_bounds = array<i64: 256, 256>}, {pipeline_mode = #tpu.pipeline_mode<synchronous>, transform_indices = @transform_4, window_bounds = array<i64: 1, 256>}, {pipeline_mode = #tpu.pipeline_mode<synchronous>, transform_indices = @transform_5, window_bounds = array<i64: 256, 128>}, {pipeline_mode = #tpu.pipeline_mode<synchronous>, transform_indices = @transform_6, window_bounds = array<i64: 1, 128>}, {pipeline_mode = #tpu.pipeline_mode<synchronous>, transform_indices = @transform_7, window_bounds = array<i64: 128, 128>}, {pipeline_mode = #tpu.pipeline_mode<synchronous>, transform_indices = @transform_8, window_bounds = array<i64: 1, 128>}, {transform_indices = @transform_9, window_bounds = array<i64: 16, 10>}]} {
    %c0 = arith.constant 0 : index
    %c0_0 = arith.constant 0 : index
    %0 = vector.load %arg1[%c0, %c0_0] : memref<16x784xbf16, #tpu.memory_space<vmem>>, vector<16x784xbf16>
    %c0_1 = arith.constant 0 : index
    %c0_2 = arith.constant 0 : index
    %1 = vector.load %arg2[%c0_1, %c0_2] : memref<784x256xbf16, #tpu.memory_space<vmem>>, vector<784x256xbf16>
    %cst = arith.constant dense<0.000000e+00> : vector<16x256xf32>
    %2 = tpu.matmul %0, %1, %cst {dimension_numbers = #tpu.dot_dimension_numbers<[1], [0], [0], [1], [0, 0, 1, 1], [], []>} : vector<16x784xbf16>, vector<784x256xbf16>, vector<16x256xf32> -> vector<16x256xf32>
    %c0_3 = arith.constant 0 : index
    %c0_4 = arith.constant 0 : index
    %3 = vector.load %arg3[%c0_3, %c0_4] : memref<1x256xf32, #tpu.memory_space<vmem>>, vector<1x256xf32>
    %4 = vector.broadcast %3 : vector<1x256xf32> to vector<16x256xf32>
    %5 = arith.addf %2, %4 : vector<16x256xf32>
    %cst_5 = arith.constant 0.000000e+00 : f32
    %6 = vector.broadcast %cst_5 : f32 to vector<16x256xf32>
    %7 = arith.maximumf %5, %6 : vector<16x256xf32>
    %8 = arith.truncf %7 : vector<16x256xf32> to vector<16x256xbf16>
    %c0_6 = arith.constant 0 : index
    %c0_7 = arith.constant 0 : index
    %9 = vector.load %arg4[%c0_6, %c0_7] : memref<256x256xbf16, #tpu.memory_space<vmem>>, vector<256x256xbf16>
    %cst_8 = arith.constant dense<0.000000e+00> : vector<16x256xf32>
    %10 = tpu.matmul %8, %9, %cst_8 {dimension_numbers = #tpu.dot_dimension_numbers<[1], [0], [0], [1], [0, 0, 1, 1], [], []>} : vector<16x256xbf16>, vector<256x256xbf16>, vector<16x256xf32> -> vector<16x256xf32>
    %c0_9 = arith.constant 0 : index
    %c0_10 = arith.constant 0 : index
    %11 = vector.load %arg5[%c0_9, %c0_10] : memref<1x256xf32, #tpu.memory_space<vmem>>, vector<1x256xf32>
    %12 = vector.broadcast %11 : vector<1x256xf32> to vector<16x256xf32>
    %13 = arith.addf %10, %12 : vector<16x256xf32>
    %cst_11 = arith.constant 0.000000e+00 : f32
    %14 = vector.broadcast %cst_11 : f32 to vector<16x256xf32>
    %15 = arith.maximumf %13, %14 : vector<16x256xf32>
    %16 = arith.truncf %15 : vector<16x256xf32> to vector<16x256xbf16>
    %c0_12 = arith.constant 0 : index
    %c0_13 = arith.constant 0 : index
    %17 = vector.load %arg6[%c0_12, %c0_13] : memref<256x128xbf16, #tpu.memory_space<vmem>>, vector<256x128xbf16>
    %cst_14 = arith.constant dense<0.000000e+00> : vector<16x128xf32>
    %18 = tpu.matmul %16, %17, %cst_14 {dimension_numbers = #tpu.dot_dimension_numbers<[1], [0], [0], [1], [0, 0, 1, 1], [], []>} : vector<16x256xbf16>, vector<256x128xbf16>, vector<16x128xf32> -> vector<16x128xf32>
    %c0_15 = arith.constant 0 : index
    %c0_16 = arith.constant 0 : index
    %19 = vector.load %arg7[%c0_15, %c0_16] : memref<1x128xf32, #tpu.memory_space<vmem>>, vector<1x128xf32>
    %20 = vector.broadcast %19 : vector<1x128xf32> to vector<16x128xf32>
    %21 = arith.addf %18, %20 : vector<16x128xf32>
    %cst_17 = arith.constant 0.000000e+00 : f32
    %22 = vector.broadcast %cst_17 : f32 to vector<16x128xf32>
    %23 = arith.maximumf %21, %22 : vector<16x128xf32>
    %24 = arith.truncf %23 : vector<16x128xf32> to vector<16x128xbf16>
    %c0_18 = arith.constant 0 : index
    %c0_19 = arith.constant 0 : index
    %25 = vector.load %arg8[%c0_18, %c0_19] : memref<128x128xbf16, #tpu.memory_space<vmem>>, vector<128x128xbf16>
    %cst_20 = arith.constant dense<0.000000e+00> : vector<16x128xf32>
    %26 = tpu.matmul %24, %25, %cst_20 {dimension_numbers = #tpu.dot_dimension_numbers<[1], [0], [0], [1], [0, 0, 1, 1], [], []>} : vector<16x128xbf16>, vector<128x128xbf16>, vector<16x128xf32> -> vector<16x128xf32>
    %c0_21 = arith.constant 0 : index
    %c0_22 = arith.constant 0 : index
    %27 = vector.load %arg9[%c0_21, %c0_22] : memref<1x128xf32, #tpu.memory_space<vmem>>, vector<1x128xf32>
    %28 = vector.broadcast %27 : vector<1x128xf32> to vector<16x128xf32>
    %29 = arith.addf %26, %28 : vector<16x128xf32>
    %cst_23 = arith.constant dense<0xFF800000> : vector<16xf32>
    %30 = vector.multi_reduction <maximumf>, %29, %cst_23 [1] : vector<16x128xf32> to vector<16xf32>
    %31 = vector.shape_cast %30 : vector<16xf32> to vector<16x1xf32>
    %32 = vector.broadcast %31 : vector<16x1xf32> to vector<16x128xf32>
    %33 = arith.subf %29, %32 : vector<16x128xf32>
    %34 = math.exp %33 : vector<16x128xf32>
    %cst_24 = arith.constant dense<0.000000e+00> : vector<16xf32>
    %35 = vector.multi_reduction <add>, %34, %cst_24 [1] : vector<16x128xf32> to vector<16xf32>
    %36 = vector.shape_cast %35 : vector<16xf32> to vector<16x1xf32>
    %37 = math.log %36 : vector<16x1xf32>
    %38 = vector.broadcast %37 : vector<16x1xf32> to vector<16x128xf32>
    %39 = arith.subf %33, %38 : vector<16x128xf32>
    %40 = vector.extract_strided_slice %39 {offsets = [0, 0], sizes = [16, 10], strides = [1, 1]} : vector<16x128xf32> to vector<16x10xf32>
    %c0_25 = arith.constant 0 : index
    %c0_26 = arith.constant 0 : index
    %41 = vector.load %arg10[%c0_25, %c0_26] : memref<16x10xf32, #tpu.memory_space<vmem>>, vector<16x10xf32>
    tpu.vector_store %arg10[%c0_25, %c0_26], %40 {strides = array<i32>} : memref<16x10xf32, #tpu.memory_space<vmem>>, vector<16x10xf32>,
    return
  }
  func.func @transform_0(%arg0: i32) -> (i32, i32) {
    %c0_i32 = arith.constant 0 : i32
    %c0_i32_0 = arith.constant 0 : i32
    return %arg0, %c0_i32 : i32, i32
  }
  func.func @transform_1(%arg0: i32) -> (i32, i32) {
    %c0_i32 = arith.constant 0 : i32
    %c0_i32_0 = arith.constant 0 : i32
    %c0_i32_1 = arith.constant 0 : i32
    return %c0_i32, %c0_i32_0 : i32, i32
  }
  func.func @transform_2(%arg0: i32) -> (i32, i32) {
    %c0_i32 = arith.constant 0 : i32
    %c0_i32_0 = arith.constant 0 : i32
    %c0_i32_1 = arith.constant 0 : i32
    return %c0_i32, %c0_i32_0 : i32, i32
  }
  func.func @transform_3(%arg0: i32) -> (i32, i32) {
    %c0_i32 = arith.constant 0 : i32
    %c0_i32_0 = arith.constant 0 : i32
    %c0_i32_1 = arith.constant 0 : i32
    return %c0_i32, %c0_i32_0 : i32, i32
  }
  func.func @transform_4(%arg0: i32) -> (i32, i32) {
    %c0_i32 = arith.constant 0 : i32
    %c0_i32_0 = arith.constant 0 : i32
    %c0_i32_1 = arith.constant 0 : i32
    return %c0_i32, %c0_i32_0 : i32, i32
  }
  func.func @transform_5(%arg0: i32) -> (i32, i32) {
    %c0_i32 = arith.constant 0 : i32
    %c0_i32_0 = arith.constant 0 : i32
    %c0_i32_1 = arith.constant 0 : i32
    return %c0_i32, %c0_i32_0 : i32, i32
  }
  func.func @transform_6(%arg0: i32) -> (i32, i32) {
    %c0_i32 = arith.constant 0 : i32
    %c0_i32_0 = arith.constant 0 : i32
    %c0_i32_1 = arith.constant 0 : i32
    return %c0_i32, %c0_i32_0 : i32, i32
  }
  func.func @transform_7(%arg0: i32) -> (i32, i32) {
    %c0_i32 = arith.constant 0 : i32
    %c0_i32_0 = arith.constant 0 : i32
    %c0_i32_1 = arith.constant 0 : i32
    return %c0_i32, %c0_i32_0 : i32, i32
  }
  func.func @transform_8(%arg0: i32) -> (i32, i32) {
    %c0_i32 = arith.constant 0 : i32
    %c0_i32_0 = arith.constant 0 : i32
    %c0_i32_1 = arith.constant 0 : i32
    return %c0_i32, %c0_i32_0 : i32, i32
  }
  func.func @transform_9(%arg0: i32) -> (i32, i32) {
    %c0_i32 = arith.constant 0 : i32
    %c0_i32_0 = arith.constant 0 : i32
    return %arg0, %c0_i32 : i32, i32
  }
}

</mosaic_0001>

<llo_original>
// kernel: net_forward.1
$region0: #{net_forward.1}
  #allocation0 [shape = 'u32[]', space=smem, size = 0x4, offset = 0x4, fixed_abs, tag = 'smem constant byte address 0x4 - core index']
  #allocation1 [shape = 'u32[144,128]{1,0:T(1,128)}', space=vmem, size = 0x12000, scoped, tag = 'internal scratch']
  %s0 = inlined_call_operand.vmem [shape: bf16[16,784], index: 0, kind: input, shape index: {}]
  %s1 = inlined_call_operand.hbm [shape: bf16[784,256], index: 1, kind: input, shape index: {}]
  %s2 = inlined_call_operand.vmem [shape: f32[1,256], index: 2, kind: input, shape index: {}]
  %s3 = inlined_call_operand.vmem [shape: bf16[256,256], index: 3, kind: input, shape index: {}]
  %s4 = inlined_call_operand.vmem [shape: f32[1,256], index: 4, kind: input, shape index: {}]
  %s5 = inlined_call_operand.vmem [shape: bf16[256,128], index: 5, kind: input, shape index: {}]
  %s6 = inlined_call_operand.vmem [shape: f32[1,128], index: 6, kind: input, shape index: {}]
  %s7 = inlined_call_operand.vmem [shape: bf16[128,128], index: 7, kind: input, shape index: {}]
  %s8 = inlined_call_operand.vmem [shape: f32[1,128], index: 8, kind: input, shape index: {}]
  %s9 = inlined_call_operand.vmem [shape: f32[16,10], index: 9, kind: output, shape index: {}]
  %s10 = sld [smem:[#allocation0]]
  $region50: #{net_forward.1} parent=0
    _
  %s12 = ssub.s32 1, %s10
  %s13 = scalar_select 0, %s12, %s10
  $region1: #{net_forward.1} parent=0
    #allocation2 [shape = 'u8[401408]{0}', space=vmem, size = 0x62000, scoped, tag = 'input window, operand 1, single buffered']
    #allocation3 [shape = 's32[1]{0}', space=sflag, size = 0x4, scoped, tag = 'scoped memory for net_forward.1']
    %14 = vsyncpa [#allocation3], 0
    // Predicated region
    $region2: #{net_forward.1} parent=1 // pred_check
      _
    $region3: #{net_forward.1} parent=1 // pred_check_branch
      %16 = sbr.rel (0) target = $region5
    $region4: #{net_forward.1} parent=1 // pred_region
      _
    $region5: #{net_forward.1} parent=1 // pred_fallthru
      _
    // Predicated region
    $region6: #{net_forward.1} parent=1 // pred_check
      _
    $region7: #{net_forward.1} parent=1 // pred_check_branch
      %18 = sbr.rel (0) target = $region9
    $region8: #{net_forward.1} parent=1 // pred_region
      %s20 = ssub.s32 12544, 12544
      %21 = vsyncadd [#allocation3], %s20
      %s22 = sshll.u32 [#allocation2], 4
      %s23 = int_to_ptr.vmem [resolvable:$true] %s22
      %28 = dma.hbm_to_vmem [thread:$0]  %s1, 12544, %s23, [#allocation3], 128, 128, 8
    $region9: #{net_forward.1} parent=1 // pred_fallthru
      _
    // Predicated region
    $region10: #{net_forward.1} parent=1 // pred_check
      _
    $region11: #{net_forward.1} parent=1 // pred_check_branch
      %30 = sbr.rel (0) target = $region13
    $region12: #{net_forward.1} parent=1 // pred_region
      _
    $region13: #{net_forward.1} parent=1 // pred_fallthru
      _
    // Predicated region
    $region14: #{net_forward.1} parent=1 // pred_check
      _
    $region15: #{net_forward.1} parent=1 // pred_check_branch
      %32 = sbr.rel (0) target = $region17
    $region16: #{net_forward.1} parent=1 // pred_region
      _
    $region17: #{net_forward.1} parent=1 // pred_fallthru
      _
    // Predicated region
    $region18: #{net_forward.1} parent=1 // pred_check
      _
    $region19: #{net_forward.1} parent=1 // pred_check_branch
      %34 = sbr.rel (0) target = $region21
    $region20: #{net_forward.1} parent=1 // pred_region
      _
    $region21: #{net_forward.1} parent=1 // pred_fallthru
      _
    // Predicated region
    $region22: #{net_forward.1} parent=1 // pred_check
      _
    $region23: #{net_forward.1} parent=1 // pred_check_branch
      %36 = sbr.rel (0) target = $region25
    $region24: #{net_forward.1} parent=1 // pred_region
      _
    $region25: #{net_forward.1} parent=1 // pred_fallthru
      _
    // Predicated region
    $region26: #{net_forward.1} parent=1 // pred_check
      _
    $region27: #{net_forward.1} parent=1 // pred_check_branch
      %38 = sbr.rel (0) target = $region29
    $region28: #{net_forward.1} parent=1 // pred_region
      _
    $region29: #{net_forward.1} parent=1 // pred_fallthru
      _
    // Predicated region
    $region30: #{net_forward.1} parent=1 // pred_check
      _
    $region31: #{net_forward.1} parent=1 // pred_check_branch
      %40 = sbr.rel (0) target = $region33
    $region32: #{net_forward.1} parent=1 // pred_region
      _
    $region33: #{net_forward.1} parent=1 // pred_fallthru
      _
    // Predicated region
    $region34: #{net_forward.1} parent=1 // pred_check
      _
    $region35: #{net_forward.1} parent=1 // pred_check_branch
      %42 = sbr.rel (0) target = $region37
    $region36: #{net_forward.1} parent=1 // pred_region
      _
    $region37: #{net_forward.1} parent=1 // pred_fallthru
      _
    // Predicated region
    $region38: #{net_forward.1} parent=1 // pred_check
      _
    $region39: #{net_forward.1} parent=1 // pred_check_branch
      %44 = sbr.rel (0) target = $region41
    $region40: #{net_forward.1} parent=1 // pred_region
      %45 = dma.done [#allocation3], 12544
    $region41: #{net_forward.1} parent=1 // pred_fallthru
      _
    %v47 = vld [vmem:[%s0] sm:$0xff]
    %v48 = vld [vmem:[%s0 + $0x8] sm:$0xff]
    %v49 = vld [vmem:[%s0 + $0x10] sm:$0xff]
    %v50 = vld [vmem:[%s0 + $0x18] sm:$0xf]
    %v51 = vld [vmem:[%s0 + $0x1c] sm:$0xff]
    %v52 = vld [vmem:[%s0 + $0x24] sm:$0xff]
    %v53 = vld [vmem:[%s0 + $0x2c] sm:$0xff]
    %v54 = vld [vmem:[%s0 + $0x34] sm:$0xf]
    %v55 = vld [vmem:[#allocation2] sm:$0xff]
    %v56 = vld [vmem:[#allocation2 + $0x8] sm:$0xff]
    %v57 = vld [vmem:[#allocation2 + $0x10] sm:$0xff]
    %v58 = vld [vmem:[#allocation2 + $0x18] sm:$0xff]
    %v59 = vld [vmem:[#allocation2 + $0x20] sm:$0xff]
    %v60 = vld [vmem:[#allocation2 + $0x28] sm:$0xff]
    %v61 = vld [vmem:[#allocation2 + $0x30] sm:$0xff]
    %v62 = vld [vmem:[#allocation2 + $0x38] sm:$0xff]
    %v63 = vld [vmem:[#allocation2 + $0x40] sm:$0xff]
    %v64 = vld [vmem:[#allocation2 + $0x48] sm:$0xff]
    %v65 = vld [vmem:[#allocation2 + $0x50] sm:$0xff]
    %v66 = vld [vmem:[#allocation2 + $0x58] sm:$0xff]
    %v67 = vld [vmem:[#allocation2 + $0x60] sm:$0xff]
    %v68 = vld [vmem:[#allocation2 + $0x68] sm:$0xff]
    %v69 = vld [vmem:[#allocation2 + $0x70] sm:$0xff]
    %v70 = vld [vmem:[#allocation2 + $0x78] sm:$0xff]
    %v71 = vld [vmem:[#allocation2 + $0x80] sm:$0xff]
    %v72 = vld [vmem:[#allocation2 + $0x88] sm:$0xff]
    %v73 = vld [vmem:[#allocation2 + $0x90] sm:$0xff]
    %v74 = vld [vmem:[#allocation2 + $0x98] sm:$0xff]
    %v75 = vld [vmem:[#allocation2 + $0xa0] sm:$0xff]
    %v76 = vld [vmem:[#allocation2 + $0xa8] sm:$0xff]
    %v77 = vld [vmem:[#allocation2 + $0xb0] sm:$0xff]
    %v78 = vld [vmem:[#allocation2 + $0xb8] sm:$0xff]
    %v79 = vld [vmem:[#allocation2 + $0xc0] sm:$0xff]
    %v80 = vld [vmem:[#allocation2 + $0xc8] sm:$0xff]
    %v81 = vld [vmem:[#allocation2 + $0xd0] sm:$0xff]
    %v82 = vld [vmem:[#allocation2 + $0xd8] sm:$0xff]
    %v83 = vld [vmem:[#allocation2 + $0xe0] sm:$0xff]
    %v84 = vld [vmem:[#allocation2 + $0xe8] sm:$0xff]
    %v85 = vld [vmem:[#allocation2 + $0xf0] sm:$0xff]
    %v86 = vld [vmem:[#allocation2 + $0xf8] sm:$0xff]
    %v87 = vld [vmem:[#allocation2 + $0x100] sm:$0xff]
    %v88 = vld [vmem:[#allocation2 + $0x108] sm:$0xff]
    %v89 = vld [vmem:[#allocation2 + $0x110] sm:$0xff]
    %v90 = vld [vmem:[#allocation2 + $0x118] sm:$0xff]
    %v91 = vld [vmem:[#allocation2 + $0x120] sm:$0xff]
    %v92 = vld [vmem:[#allocation2 + $0x128] sm:$0xff]
    %v93 = vld [vmem:[#allocation2 + $0x130] sm:$0xff]
    %v94 = vld [vmem:[#allocation2 + $0x138] sm:$0xff]
    %v95 = vld [vmem:[#allocation2 + $0x140] sm:$0xff]
    %v96 = vld [vmem:[#allocation2 + $0x148] sm:$0xff]
    %v97 = vld [vmem:[#allocation2 + $0x150] sm:$0xff]
    %v98 = vld [vmem:[#allocation2 + $0x158] sm:$0xff]
    %v99 = vld [vmem:[#allocation2 + $0x160] sm:$0xff]
    %v100 = vld [vmem:[#allocation2 + $0x168] sm:$0xff]
    %v101 = vld [vmem:[#allocation2 + $0x170] sm:$0xff]
    %v102 = vld [vmem:[#allocation2 + $0x178] sm:$0xff]
    %v103 = vld [vmem:[#allocation2 + $0x180] sm:$0xff]
    %v104 = vld [vmem:[#allocation2 + $0x188] sm:$0xff]
    %v105 = vld [vmem:[#allocation2 + $0x190] sm:$0xff]
    %v106 = vld [vmem:[#allocation2 + $0x198] sm:$0xff]
    %v107 = vld [vmem:[#allocation2 + $0x1a0] sm:$0xff]
    %v108 = vld [vmem:[#allocation2 + $0x1a8] sm:$0xff]
    %v109 = vld [vmem:[#allocation2 + $0x1b0] sm:$0xff]
    %v110 = vld [vmem:[#allocation2 + $0x1b8] sm:$0xff]
    %v111 = vld [vmem:[#allocation2 + $0x1c0] sm:$0xff]
    %v112 = vld [vmem:[#allocation2 + $0x1c8] sm:$0xff]
    %v113 = vld [vmem:[#allocation2 + $0x1d0] sm:$0xff]
    %v114 = vld [vmem:[#allocation2 + $0x1d8] sm:$0xff]
    %v115 = vld [vmem:[#allocation2 + $0x1e0] sm:$0xff]
    %v116 = vld [vmem:[#allocation2 + $0x1e8] sm:$0xff]
    %v117 = vld [vmem:[#allocation2 + $0x1f0] sm:$0xff]
    %v118 = vld [vmem:[#allocation2 + $0x1f8] sm:$0xff]
    %v119 = vld [vmem:[#allocation2 + $0x200] sm:$0xff]
    %v120 = vld [vmem:[#allocation2 + $0x208] sm:$0xff]
    %v121 = vld [vmem:[#allocation2 + $0x210] sm:$0xff]
    %v122 = vld [vmem:[#allocation2 + $0x218] sm:$0xff]
    %v123 = vld [vmem:[#allocation2 + $0x220] sm:$0xff]
    %v124 = vld [vmem:[#allocation2 + $0x228] sm:$0xff]
    %v125 = vld [vmem:[#allocation2 + $0x230] sm:$0xff]
    %v126 = vld [vmem:[#allocation2 + $0x238] sm:$0xff]
    %v127 = vld [vmem:[#allocation2 + $0x240] sm:$0xff]
    %v128 = vld [vmem:[#allocation2 + $0x248] sm:$0xff]
    %v129 = vld [vmem:[#allocation2 + $0x250] sm:$0xff]
    %v130 = vld [vmem:[#allocation2 + $0x258] sm:$0xff]
    %v131 = vld [vmem:[#allocation2 + $0x260] sm:$0xff]
    %v132 = vld [vmem:[#allocation2 + $0x268] sm:$0xff]
    %v133 = vld [vmem:[#allocation2 + $0x270] sm:$0xff]
    %v134 = vld [vmem:[#allocation2 + $0x278] sm:$0xff]
    %v135 = vld [vmem:[#allocation2 + $0x280] sm:$0xff]
    %v136 = vld [vmem:[#allocation2 + $0x288] sm:$0xff]
    %v137 = vld [vmem:[#allocation2 + $0x290] sm:$0xff]
    %v138 = vld [vmem:[#allocation2 + $0x298] sm:$0xff]
    %v139 = vld [vmem:[#allocation2 + $0x2a0] sm:$0xff]
    %v140 = vld [vmem:[#allocation2 + $0x2a8] sm:$0xff]
    %v141 = vld [vmem:[#allocation2 + $0x2b0] sm:$0xff]
    %v142 = vld [vmem:[#allocation2 + $0x2b8] sm:$0xff]
    %v143 = vld [vmem:[#allocation2 + $0x2c0] sm:$0xff]
    %v144 = vld [vmem:[#allocation2 + $0x2c8] sm:$0xff]
    %v145 = vld [vmem:[#allocation2 + $0x2d0] sm:$0xff]
    %v146 = vld [vmem:[#allocation2 + $0x2d8] sm:$0xff]
    %v147 = vld [vmem:[#allocation2 + $0x2e0] sm:$0xff]
    %v148 = vld [vmem:[#allocation2 + $0x2e8] sm:$0xff]
    %v149 = vld [vmem:[#allocation2 + $0x2f0] sm:$0xff]
    %v150 = vld [vmem:[#allocation2 + $0x2f8] sm:$0xff]
    %v151 = vld [vmem:[#allocation2 + $0x300] sm:$0xff]
    %v152 = vld [vmem:[#allocation2 + $0x308] sm:$0xff]
    %v153 = vld [vmem:[%s2] sm:$0x3]
    %v155 = vlaneseq
    %v156 = vshrl.u32 %v155, 7
    %v157 = vsub.s32 0, %v156
    %v158 = vrot.slane %v153, %v157
    %v159 = vlaneseq
    %v160 = vshrl.u32 %v159, 7
    %v161 = vsub.s32 1, %v160
    %v162 = vrot.slane %v153, %v161
    %v173 = vunpack.c.l.b16 %v47
    %v174 = vunpack.c.h.b16 %v47
    %v175 = vunpack.c.l.b16 %v48
    %v176 = vunpack.c.h.b16 %v48
    %v177 = vunpack.c.l.b16 %v49
    %v178 = vunpack.c.h.b16 %v49
    %v179 = vunpack.c.l.b16 %v50
    %v180 = vunpack.c.l.b16 %v51
    %v181 = vunpack.c.h.b16 %v51
    %v182 = vunpack.c.l.b16 %v52
    %v183 = vunpack.c.h.b16 %v52
    %v184 = vunpack.c.l.b16 %v53
    %v185 = vunpack.c.h.b16 %v53
    %v186 = vunpack.c.l.b16 %v54
    %v187 = vpack.c.b16 %v180, %v173
    %v188 = vpack.c.b16 %v181, %v174
    %v189 = vpack.c.b16 %v182, %v175
    %v190 = vpack.c.b16 %v183, %v176
    %v191 = vpack.c.b16 %v184, %v177
    %v192 = vpack.c.b16 %v185, %v178
    %v193 = vpack.c.b16 %v186, %v179
    %v298 = vunpack.c.l.b16 %v55
    %v299 = vunpack.c.h.b16 %v55
    %v300 = vunpack.c.l.b16 %v56
    %v301 = vunpack.c.h.b16 %v56
    %v302 = vunpack.c.l.b16 %v57
    %v303 = vunpack.c.h.b16 %v57
    %v304 = vunpack.c.l.b16 %v58
    %v305 = vunpack.c.h.b16 %v58
    %v306 = vunpack.c.l.b16 %v59
    %v307 = vunpack.c.h.b16 %v59
    %v308 = vunpack.c.l.b16 %v60
    %v309 = vunpack.c.h.b16 %v60
    %v310 = vunpack.c.l.b16 %v61
    %v311 = vunpack.c.h.b16 %v61
    %v312 = vunpack.c.l.b16 %v62
    %v313 = vunpack.c.h.b16 %v62
    %v314 = vunpack.c.l.b16 %v63
    %v315 = vunpack.c.h.b16 %v63
    %v316 = vunpack.c.l.b16 %v64
    %v317 = vunpack.c.h.b16 %v64
    %v318 = vunpack.c.l.b16 %v65
    %v319 = vunpack.c.h.b16 %v65
    %v320 = vunpack.c.l.b16 %v66
    %v321 = vunpack.c.h.b16 %v66
    %v322 = vunpack.c.l.b16 %v67
    %v323 = vunpack.c.h.b16 %v67
    %v324 = vunpack.c.l.b16 %v68
    %v325 = vunpack.c.h.b16 %v68
    %v326 = vunpack.c.l.b16 %v69
    %v327 = vunpack.c.h.b16 %v69
    %v328 = vunpack.c.l.b16 %v70
    %v329 = vunpack.c.h.b16 %v70
    %v330 = vunpack.c.l.b16 %v71
    %v331 = vunpack.c.h.b16 %v71
    %v332 = vunpack.c.l.b16 %v72
    %v333 = vunpack.c.h.b16 %v72
    %v334 = vunpack.c.l.b16 %v73
    %v335 = vunpack.c.h.b16 %v73
    %v336 = vunpack.c.l.b16 %v74
    %v337 = vunpack.c.h.b16 %v74
    %v338 = vunpack.c.l.b16 %v75
    %v339 = vunpack.c.h.b16 %v75
    %v340 = vunpack.c.l.b16 %v76
    %v341 = vunpack.c.h.b16 %v76
    %v342 = vunpack.c.l.b16 %v77
    %v343 = vunpack.c.h.b16 %v77
    %v344 = vunpack.c.l.b16 %v78
    %v345 = vunpack.c.h.b16 %v78
    %v346 = vunpack.c.l.b16 %v79
    %v347 = vunpack.c.h.b16 %v79
    %v348 = vunpack.c.l.b16 %v80
    %v349 = vunpack.c.h.b16 %v80
    %v350 = vunpack.c.l.b16 %v81
    %v351 = vunpack.c.h.b16 %v81
    %v352 = vunpack.c.l.b16 %v82
    %v353 = vunpack.c.h.b16 %v82
    %v354 = vunpack.c.l.b16 %v83
    %v355 = vunpack.c.h.b16 %v83
    %v356 = vunpack.c.l.b16 %v84
    %v357 = vunpack.c.h.b16 %v84
    %v358 = vunpack.c.l.b16 %v85
    %v359 = vunpack.c.h.b16 %v85
    %v360 = vunpack.c.l.b16 %v86
    %v361 = vunpack.c.h.b16 %v86
    %v362 = vunpack.c.l.b16 %v87
    %v363 = vunpack.c.h.b16 %v87
    %v364 = vunpack.c.l.b16 %v88
    %v365 = vunpack.c.h.b16 %v88
    %v366 = vunpack.c.l.b16 %v89
    %v367 = vunpack.c.h.b16 %v89
    %v368 = vunpack.c.l.b16 %v90
    %v369 = vunpack.c.h.b16 %v90
    %v370 = vunpack.c.l.b16 %v91
    %v371 = vunpack.c.h.b16 %v91
    %v372 = vunpack.c.l.b16 %v92
    %v373 = vunpack.c.h.b16 %v92
    %v374 = vunpack.c.l.b16 %v93
    %v375 = vunpack.c.h.b16 %v93
    %v376 = vunpack.c.l.b16 %v94
    %v377 = vunpack.c.h.b16 %v94
    %v378 = vunpack.c.l.b16 %v95
    %v379 = vunpack.c.h.b16 %v95
    %v380 = vunpack.c.l.b16 %v96
    %v381 = vunpack.c.h.b16 %v96
    %v382 = vunpack.c.l.b16 %v97
    %v383 = vunpack.c.h.b16 %v97
    %v384 = vunpack.c.l.b16 %v98
    %v385 = vunpack.c.h.b16 %v98
    %v386 = vunpack.c.l.b16 %v99
    %v387 = vunpack.c.h.b16 %v99
    %v388 = vunpack.c.l.b16 %v100
    %v389 = vunpack.c.h.b16 %v100
    %v390 = vunpack.c.l.b16 %v101
    %v391 = vunpack.c.h.b16 %v101
    %v392 = vunpack.c.l.b16 %v102
    %v393 = vunpack.c.h.b16 %v102
    %v394 = vunpack.c.l.b16 %v103
    %v395 = vunpack.c.h.b16 %v103
    %v396 = vunpack.c.l.b16 %v104
    %v397 = vunpack.c.h.b16 %v104
    %v398 = vunpack.c.l.b16 %v105
    %v399 = vunpack.c.h.b16 %v105
    %v400 = vunpack.c.l.b16 %v106
    %v401 = vunpack.c.h.b16 %v106
    %v402 = vunpack.c.l.b16 %v107
    %v403 = vunpack.c.h.b16 %v107
    %v404 = vunpack.c.l.b16 %v108
    %v405 = vunpack.c.h.b16 %v108
    %v406 = vunpack.c.l.b16 %v109
    %v407 = vunpack.c.h.b16 %v109
    %v408 = vunpack.c.l.b16 %v110
    %v409 = vunpack.c.h.b16 %v110
    %v410 = vunpack.c.l.b16 %v111
    %v411 = vunpack.c.h.b16 %v111
    %v412 = vunpack.c.l.b16 %v112
    %v413 = vunpack.c.h.b16 %v112
    %v414 = vunpack.c.l.b16 %v113
    %v415 = vunpack.c.h.b16 %v113
    %v416 = vunpack.c.l.b16 %v114
    %v417 = vunpack.c.h.b16 %v114
    %v418 = vunpack.c.l.b16 %v115
    %v419 = vunpack.c.h.b16 %v115
    %v420 = vunpack.c.l.b16 %v116
    %v421 = vunpack.c.h.b16 %v116
    %v422 = vunpack.c.l.b16 %v117
    %v423 = vunpack.c.h.b16 %v117
    %v424 = vunpack.c.l.b16 %v118
    %v425 = vunpack.c.h.b16 %v118
    %v426 = vunpack.c.l.b16 %v119
    %v427 = vunpack.c.h.b16 %v119
    %v428 = vunpack.c.l.b16 %v120
    %v429 = vunpack.c.h.b16 %v120
    %v430 = vunpack.c.l.b16 %v121
    %v431 = vunpack.c.h.b16 %v121
    %v432 = vunpack.c.l.b16 %v122
    %v433 = vunpack.c.h.b16 %v122
    %v434 = vunpack.c.l.b16 %v123
    %v435 = vunpack.c.h.b16 %v123
    %v436 = vunpack.c.l.b16 %v124
    %v437 = vunpack.c.h.b16 %v124
    %v438 = vunpack.c.l.b16 %v125
    %v439 = vunpack.c.h.b16 %v125
    %v440 = vunpack.c.l.b16 %v126
    %v441 = vunpack.c.h.b16 %v126
    %v442 = vunpack.c.l.b16 %v127
    %v443 = vunpack.c.h.b16 %v127
    %v444 = vunpack.c.l.b16 %v128
    %v445 = vunpack.c.h.b16 %v128
    %v446 = vunpack.c.l.b16 %v129
    %v447 = vunpack.c.h.b16 %v129
    %v448 = vunpack.c.l.b16 %v130
    %v449 = vunpack.c.h.b16 %v130
    %v450 = vunpack.c.l.b16 %v131
    %v451 = vunpack.c.h.b16 %v131
    %v452 = vunpack.c.l.b16 %v132
    %v453 = vunpack.c.h.b16 %v132
    %v454 = vunpack.c.l.b16 %v133
    %v455 = vunpack.c.h.b16 %v133
    %v456 = vunpack.c.l.b16 %v134
    %v457 = vunpack.c.h.b16 %v134
    %v458 = vunpack.c.l.b16 %v135
    %v459 = vunpack.c.h.b16 %v135
    %v460 = vunpack.c.l.b16 %v136
    %v461 = vunpack.c.h.b16 %v136
    %v462 = vunpack.c.l.b16 %v137
    %v463 = vunpack.c.h.b16 %v137
    %v464 = vunpack.c.l.b16 %v138
    %v465 = vunpack.c.h.b16 %v138
    %v466 = vunpack.c.l.b16 %v139
    %v467 = vunpack.c.h.b16 %v139
    %v468 = vunpack.c.l.b16 %v140
    %v469 = vunpack.c.h.b16 %v140
    %v470 = vunpack.c.l.b16 %v141
    %v471 = vunpack.c.h.b16 %v141
    %v472 = vunpack.c.l.b16 %v142
    %v473 = vunpack.c.h.b16 %v142
    %v474 = vunpack.c.l.b16 %v143
    %v475 = vunpack.c.h.b16 %v143
    %v476 = vunpack.c.l.b16 %v144
    %v477 = vunpack.c.h.b16 %v144
    %v478 = vunpack.c.l.b16 %v145
    %v479 = vunpack.c.h.b16 %v145
    %v480 = vunpack.c.l.b16 %v146
    %v481 = vunpack.c.h.b16 %v146
    %v482 = vunpack.c.l.b16 %v147
    %v483 = vunpack.c.h.b16 %v147
    %v484 = vunpack.c.l.b16 %v148
    %v485 = vunpack.c.h.b16 %v148
    %v486 = vunpack.c.l.b16 %v149
    %v487 = vunpack.c.h.b16 %v149
    %v488 = vunpack.c.l.b16 %v150
    %v489 = vunpack.c.h.b16 %v150
    %v490 = vunpack.c.l.b16 %v151
    %v491 = vunpack.c.h.b16 %v151
    %v492 = vunpack.c.l.b16 %v152
    %v493 = vunpack.c.h.b16 %v152
    %v494 = vpack.c.b16 %v300, %v298
    %v495 = vpack.c.b16 %v301, %v299
    %v496 = vpack.c.b16 %v304, %v302
    %v497 = vpack.c.b16 %v305, %v303
    %v498 = vpack.c.b16 %v308, %v306
    %v499 = vpack.c.b16 %v309, %v307
    %v500 = vpack.c.b16 %v312, %v310
    %v501 = vpack.c.b16 %v313, %v311
    %v502 = vpack.c.b16 %v316, %v314
    %v503 = vpack.c.b16 %v317, %v315
    %v504 = vpack.c.b16 %v320, %v318
    %v505 = vpack.c.b16 %v321, %v319
    %v506 = vpack.c.b16 %v324, %v322
    %v507 = vpack.c.b16 %v325, %v323
    %v508 = vpack.c.b16 %v328, %v326
    %v509 = vpack.c.b16 %v329, %v327
    %v510 = vpack.c.b16 %v332, %v330
    %v511 = vpack.c.b16 %v333, %v331
    %v512 = vpack.c.b16 %v336, %v334
    %v513 = vpack.c.b16 %v337, %v335
    %v514 = vpack.c.b16 %v340, %v338
    %v515 = vpack.c.b16 %v341, %v339
    %v516 = vpack.c.b16 %v344, %v342
    %v517 = vpack.c.b16 %v345, %v343
    %v518 = vpack.c.b16 %v348, %v346
    %v519 = vpack.c.b16 %v349, %v347
    %v520 = vpack.c.b16 %v352, %v350
    %v521 = vpack.c.b16 %v353, %v351
    %v522 = vpack.c.b16 %v356, %v354
    %v523 = vpack.c.b16 %v357, %v355
    %v524 = vpack.c.b16 %v360, %v358
    %v525 = vpack.c.b16 %v361, %v359
    %v526 = vpack.c.b16 %v364, %v362
    %v527 = vpack.c.b16 %v365, %v363
    %v528 = vpack.c.b16 %v368, %v366
    %v529 = vpack.c.b16 %v369, %v367
    %v530 = vpack.c.b16 %v372, %v370
    %v531 = vpack.c.b16 %v373, %v371
    %v532 = vpack.c.b16 %v376, %v374
    %v533 = vpack.c.b16 %v377, %v375
    %v534 = vpack.c.b16 %v380, %v378
    %v535 = vpack.c.b16 %v381, %v379
    %v536 = vpack.c.b16 %v384, %v382
    %v537 = vpack.c.b16 %v385, %v383
    %v538 = vpack.c.b16 %v388, %v386
    %v539 = vpack.c.b16 %v389, %v387
    %v540 = vpack.c.b16 %v392, %v390
    %v541 = vpack.c.b16 %v393, %v391
    %v542 = vpack.c.b16 %v396, %v394
    %v543 = vpack.c.b16 %v397, %v395
    %v544 = vpack.c.b16 %v400, %v398
    %v545 = vpack.c.b16 %v401, %v399
    %v546 = vpack.c.b16 %v404, %v402
    %v547 = vpack.c.b16 %v405, %v403
    %v548 = vpack.c.b16 %v408, %v406
    %v549 = vpack.c.b16 %v409, %v407
    %v550 = vpack.c.b16 %v412, %v410
    %v551 = vpack.c.b16 %v413, %v411
    %v552 = vpack.c.b16 %v416, %v414
    %v553 = vpack.c.b16 %v417, %v415
    %v554 = vpack.c.b16 %v420, %v418
    %v555 = vpack.c.b16 %v421, %v419
    %v556 = vpack.c.b16 %v424, %v422
    %v557 = vpack.c.b16 %v425, %v423
    %v558 = vpack.c.b16 %v428, %v426
    %v559 = vpack.c.b16 %v429, %v427
    %v560 = vpack.c.b16 %v432, %v430
    %v561 = vpack.c.b16 %v433, %v431
    %v562 = vpack.c.b16 %v436, %v434
    %v563 = vpack.c.b16 %v437, %v435
    %v564 = vpack.c.b16 %v440, %v438
    %v565 = vpack.c.b16 %v441, %v439
    %v566 = vpack.c.b16 %v444, %v442
    %v567 = vpack.c.b16 %v445, %v443
    %v568 = vpack.c.b16 %v448, %v446
    %v569 = vpack.c.b16 %v449, %v447
    %v570 = vpack.c.b16 %v452, %v450
    %v571 = vpack.c.b16 %v453, %v451
    %v572 = vpack.c.b16 %v456, %v454
    %v573 = vpack.c.b16 %v457, %v455
    %v574 = vpack.c.b16 %v460, %v458
    %v575 = vpack.c.b16 %v461, %v459
    %v576 = vpack.c.b16 %v464, %v462
    %v577 = vpack.c.b16 %v465, %v463
    %v578 = vpack.c.b16 %v468, %v466
    %v579 = vpack.c.b16 %v469, %v467
    %v580 = vpack.c.b16 %v472, %v470
    %v581 = vpack.c.b16 %v473, %v471
    %v582 = vpack.c.b16 %v476, %v474
    %v583 = vpack.c.b16 %v477, %v475
    %v584 = vpack.c.b16 %v480, %v478
    %v585 = vpack.c.b16 %v481, %v479
    %v586 = vpack.c.b16 %v484, %v482
    %v587 = vpack.c.b16 %v485, %v483
    %v588 = vpack.c.b16 %v488, %v486
    %v589 = vpack.c.b16 %v489, %v487
    %v590 = vpack.c.b16 %v492, %v490
    %v591 = vpack.c.b16 %v493, %v491
    %vm690 = vcmask 130048
    %v692 = vsel %vm690, %v193, 0
    %694 = vmatprep.subr.bf16.mxu0 %v495
    %695 = vmatpush1.bf16.msra.mxu0 %v494
    %696 = vmatprep.subr.bf16.mxu0 %v497
    %697 = vmatpush1.bf16.msra.mxu0 %v496
    %698 = vmatprep.subr.bf16.mxu0 %v499
    %699 = vmatpush1.bf16.msra.mxu0 %v498
    %700 = vmatprep.subr.bf16.mxu0 %v501
    %701 = vmatpush1.bf16.msra.mxu0 %v500
    %702 = vmatprep.subr.bf16.mxu0 %v503
    %703 = vmatpush1.bf16.msra.mxu0 %v502
    %704 = vmatprep.subr.bf16.mxu0 %v505
    %705 = vmatpush1.bf16.msra.mxu0 %v504
    %706 = vmatprep.subr.bf16.mxu0 %v507
    %707 = vmatpush1.bf16.msra.mxu0 %v506
    %708 = vmatprep.subr.bf16.mxu0 %v509
    %709 = vmatpush1.bf16.msra.mxu0 %v508
    %710 = vmatprep.subr.bf16.mxu0 %v511
    %711 = vmatpush1.bf16.msra.mxu0 %v510
    %712 = vmatprep.subr.bf16.mxu0 %v513
    %713 = vmatpush1.bf16.msra.mxu0 %v512
    %714 = vmatprep.subr.bf16.mxu0 %v515
    %715 = vmatpush1.bf16.msra.mxu0 %v514
    %716 = vmatprep.subr.bf16.mxu0 %v517
    %717 = vmatpush1.bf16.msra.mxu0 %v516
    %718 = vmatprep.subr.bf16.mxu0 %v519
    %719 = vmatpush1.bf16.msra.mxu0 %v518
    %720 = vmatprep.subr.bf16.mxu0 %v521
    %721 = vmatpush1.bf16.msra.mxu0 %v520
    %722 = vmatprep.subr.bf16.mxu0 %v523
    %723 = vmatpush1.bf16.msra.mxu0 %v522
    %724 = vmatprep.subr.bf16.mxu0 %v525
    %725 = vmatpush1.bf16.msra.mxu0 %v524
    %726 = vmatprep.mubr.bf16.mxu0 %v188
    %727 = vmatmul.mubr.bf16.gmra.mrb[0].mxu0 %v187
    %v728 = vpop.f32.mrb[0].mxu0
    %v729 = vadd.f32 %v158, %v728
    %v730 = vpop.f32.mrb[0].mxu0
    %v731 = vadd.f32 %v162, %v730
    %v732 = vpop.f32.mrb[0].mxu0
    %v733 = vadd.f32 %v158, %v732
    %v734 = vpop.f32.mrb[0].mxu0
    %v735 = vadd.f32 %v162, %v734
    %736 = vdwg.mxu0
    %737 = vmatprep.subr.bf16.mxu0 %v527
    %738 = vmatpush1.bf16.msra.mxu0 %v526
    %739 = vmatprep.subr.bf16.mxu0 %v529
    %740 = vmatpush1.bf16.msra.mxu0 %v528
    %741 = vmatprep.subr.bf16.mxu0 %v531
    %742 = vmatpush1.bf16.msra.mxu0 %v530
    %743 = vmatprep.subr.bf16.mxu0 %v533
    %744 = vmatpush1.bf16.msra.mxu0 %v532
    %745 = vmatprep.subr.bf16.mxu0 %v535
    %746 = vmatpush1.bf16.msra.mxu0 %v534
    %747 = vmatprep.subr.bf16.mxu0 %v537
    %748 = vmatpush1.bf16.msra.mxu0 %v536
    %749 = vmatprep.subr.bf16.mxu0 %v539
    %750 = vmatpush1.bf16.msra.mxu0 %v538
    %751 = vmatprep.subr.bf16.mxu0 %v541
    %752 = vmatpush1.bf16.msra.mxu0 %v540
    %753 = vmatprep.subr.bf16.mxu0 %v543
    %754 = vmatpush1.bf16.msra.mxu0 %v542
    %755 = vmatprep.subr.bf16.mxu0 %v545
    %756 = vmatpush1.bf16.msra.mxu0 %v544
    %757 = vmatprep.subr.bf16.mxu0 %v547
    %758 = vmatpush1.bf16.msra.mxu0 %v546
    %759 = vmatprep.subr.bf16.mxu0 %v549
    %760 = vmatpush1.bf16.msra.mxu0 %v548
    %761 = vmatprep.subr.bf16.mxu0 %v551
    %762 = vmatpush1.bf16.msra.mxu0 %v550
    %763 = vmatprep.subr.bf16.mxu0 %v553
    %764 = vmatpush1.bf16.msra.mxu0 %v552
    %765 = vmatprep.subr.bf16.mxu0 %v555
    %766 = vmatpush1.bf16.msra.mxu0 %v554
    %767 = vmatprep.subr.bf16.mxu0 %v557
    %768 = vmatpush1.bf16.msra.mxu0 %v556
    %769 = vmatprep.mubr.bf16.mxu0 %v190
    %770 = vmatmul.mubr.bf16.gmra.mrb[0].mxu0 %v189
    %v771 = vpop.f32.mrb[0].mxu0
    %v772 = vadd.f32 %v729, %v771
    %v773 = vpop.f32.mrb[0].mxu0
    %v774 = vadd.f32 %v731, %v773
    %v775 = vpop.f32.mrb[0].mxu0
    %v776 = vadd.f32 %v733, %v775
    %v777 = vpop.f32.mrb[0].mxu0
    %v778 = vadd.f32 %v735, %v777
    %779 = vdwg.mxu0
    %780 = vmatprep.subr.bf16.mxu0 %v559
    %781 = vmatpush1.bf16.msra.mxu0 %v558
    %782 = vmatprep.subr.bf16.mxu0 %v561
    %783 = vmatpush1.bf16.msra.mxu0 %v560
    %784 = vmatprep.subr.bf16.mxu0 %v563
    %785 = vmatpush1.bf16.msra.mxu0 %v562
    %786 = vmatprep.subr.bf16.mxu0 %v565
    %787 = vmatpush1.bf16.msra.mxu0 %v564
    %788 = vmatprep.subr.bf16.mxu0 %v567
    %789 = vmatpush1.bf16.msra.mxu0 %v566
    %790 = vmatprep.subr.bf16.mxu0 %v569
    %791 = vmatpush1.bf16.msra.mxu0 %v568
    %792 = vmatprep.subr.bf16.mxu0 %v571
    %793 = vmatpush1.bf16.msra.mxu0 %v570
    %794 = vmatprep.subr.bf16.mxu0 %v573
    %795 = vmatpush1.bf16.msra.mxu0 %v572
    %796 = vmatprep.subr.bf16.mxu0 %v575
    %797 = vmatpush1.bf16.msra.mxu0 %v574
    %798 = vmatprep.subr.bf16.mxu0 %v577
    %799 = vmatpush1.bf16.msra.mxu0 %v576
    %800 = vmatprep.subr.bf16.mxu0 %v579
    %801 = vmatpush1.bf16.msra.mxu0 %v578
    %802 = vmatprep.subr.bf16.mxu0 %v581
    %803 = vmatpush1.bf16.msra.mxu0 %v580
    %804 = vmatprep.subr.bf16.mxu0 %v583
    %805 = vmatpush1.bf16.msra.mxu0 %v582
    %806 = vmatprep.subr.bf16.mxu0 %v585
    %807 = vmatpush1.bf16.msra.mxu0 %v584
    %808 = vmatprep.subr.bf16.mxu0 %v587
    %809 = vmatpush1.bf16.msra.mxu0 %v586
    %810 = vmatprep.subr.bf16.mxu0 %v589
    %811 = vmatpush1.bf16.msra.mxu0 %v588
    %812 = vmatprep.mubr.bf16.mxu0 %v192
    %813 = vmatmul.mubr.bf16.gmra.mrb[0].mxu0 %v191
    %v814 = vpop.f32.mrb[0].mxu0
    %v815 = vadd.f32 %v772, %v814
    %v816 = vpop.f32.mrb[0].mxu0
    %v817 = vadd.f32 %v774, %v816
    %v818 = vpop.f32.mrb[0].mxu0
    %v819 = vadd.f32 %v776, %v818
    %v820 = vpop.f32.mrb[0].mxu0
    %v821 = vadd.f32 %v778, %v820
    %822 = vdwg.mxu0
    %823 = vmatprep.subr.bf16.mxu0 %v591
    %824 = vmatpush1.bf16.msra.mxu0 %v590
    %825 = vmatprep.subr.bf16.mxu0 0
    %826 = vmatpush1.bf16.msra.mxu0 0
    %827 = vmatprep.subr.bf16.mxu0 0
    %828 = vmatpush1.bf16.msra.mxu0 0
    %829 = vmatprep.subr.bf16.mxu0 0
    %830 = vmatpush1.bf16.msra.mxu0 0
    %831 = vmatprep.subr.bf16.mxu0 0
    %832 = vmatpush1.bf16.msra.mxu0 0
    %833 = vmatprep.subr.bf16.mxu0 0
    %834 = vmatpush1.bf16.msra.mxu0 0
    %835 = vmatprep.subr.bf16.mxu0 0
    %836 = vmatpush1.bf16.msra.mxu0 0
    %837 = vmatprep.subr.bf16.mxu0 0
    %838 = vmatpush1.bf16.msra.mxu0 0
    %839 = vmatprep.subr.bf16.mxu0 0
    %840 = vmatpush1.bf16.msra.mxu0 0
    %841 = vmatprep.subr.bf16.mxu0 0
    %842 = vmatpush1.bf16.msra.mxu0 0
    %843 = vmatprep.subr.bf16.mxu0 0
    %844 = vmatpush1.bf16.msra.mxu0 0
    %845 = vmatprep.subr.bf16.mxu0 0
    %846 = vmatpush1.bf16.msra.mxu0 0
    %847 = vmatprep.subr.bf16.mxu0 0
    %848 = vmatpush1.bf16.msra.mxu0 0
    %849 = vmatprep.subr.bf16.mxu0 0
    %850 = vmatpush1.bf16.msra.mxu0 0
    %851 = vmatprep.subr.bf16.mxu0 0
    %852 = vmatpush1.bf16.msra.mxu0 0
    %853 = vmatprep.subr.bf16.mxu0 0
    %854 = vmatpush1.bf16.msra.mxu0 0
    %855 = vmatprep.mubr.bf16.mxu0 0
    %856 = vmatmul.mubr.bf16.gmra.mrb[0].mxu0 %v692
    %v857 = vpop.f32.mrb[0].mxu0
    %v858 = vadd.f32 %v815, %v857
    %v859 = vpop.f32.mrb[0].mxu0
    %v860 = vadd.f32 %v817, %v859
    %v861 = vpop.f32.mrb[0].mxu0
    %v862 = vadd.f32 %v819, %v861
    %v863 = vpop.f32.mrb[0].mxu0
    %v864 = vadd.f32 %v821, %v863
    %865 = vdwg.mxu0
    %v866 = vmax.f32 %v858, 0.0
    %v867 = vmax.f32 %v860, 0.0
    %v868 = vmax.f32 %v862, 0.0
    %v869 = vmax.f32 %v864, 0.0
    %v870 = vpack.c.bf16 %v868, %v866
    %v871 = vpack.c.bf16 %v869, %v867
    %v872 = vld [vmem:[%s3] sm:$0xff]
    %v873 = vld [vmem:[%s3 + $0x8] sm:$0xff]
    %v874 = vld [vmem:[%s3 + $0x10] sm:$0xff]
    %v875 = vld [vmem:[%s3 + $0x18] sm:$0xff]
    %v876 = vld [vmem:[%s3 + $0x20] sm:$0xff]
    %v877 = vld [vmem:[%s3 + $0x28] sm:$0xff]
    %v878 = vld [vmem:[%s3 + $0x30] sm:$0xff]
    %v879 = vld [vmem:[%s3 + $0x38] sm:$0xff]
    %v880 = vld [vmem:[%s3 + $0x40] sm:$0xff]
    %v881 = vld [vmem:[%s3 + $0x48] sm:$0xff]
    %v882 = vld [vmem:[%s3 + $0x50] sm:$0xff]
    %v883 = vld [vmem:[%s3 + $0x58] sm:$0xff]
    %v884 = vld [vmem:[%s3 + $0x60] sm:$0xff]
    %v885 = vld [vmem:[%s3 + $0x68] sm:$0xff]
    %v886 = vld [vmem:[%s3 + $0x70] sm:$0xff]
    %v887 = vld [vmem:[%s3 + $0x78] sm:$0xff]
    %v888 = vld [vmem:[%s3 + $0x80] sm:$0xff]
    %v889 = vld [vmem:[%s3 + $0x88] sm:$0xff]
    %v890 = vld [vmem:[%s3 + $0x90] sm:$0xff]
    %v891 = vld [vmem:[%s3 + $0x98] sm:$0xff]
    %v892 = vld [vmem:[%s3 + $0xa0] sm:$0xff]
    %v893 = vld [vmem:[%s3 + $0xa8] sm:$0xff]
    %v894 = vld [vmem:[%s3 + $0xb0] sm:$0xff]
    %v895 = vld [vmem:[%s3 + $0xb8] sm:$0xff]
    %v896 = vld [vmem:[%s3 + $0xc0] sm:$0xff]
    %v897 = vld [vmem:[%s3 + $0xc8] sm:$0xff]
    %v898 = vld [vmem:[%s3 + $0xd0] sm:$0xff]
    %v899 = vld [vmem:[%s3 + $0xd8] sm:$0xff]
    %v900 = vld [vmem:[%s3 + $0xe0] sm:$0xff]
    %v901 = vld [vmem:[%s3 + $0xe8] sm:$0xff]
    %v902 = vld [vmem:[%s3 + $0xf0] sm:$0xff]
    %v903 = vld [vmem:[%s3 + $0xf8] sm:$0xff]
    %v904 = vld [vmem:[%s4] sm:$0x3]
    %v906 = vlaneseq
    %v907 = vshrl.u32 %v906, 7
    %v908 = vsub.s32 0, %v907
    %v909 = vrot.slane %v904, %v908
    %v910 = vlaneseq
    %v911 = vshrl.u32 %v910, 7
    %v912 = vsub.s32 1, %v911
    %v913 = vrot.slane %v904, %v912
    %v948 = vunpack.c.l.b16 %v872
    %v949 = vunpack.c.h.b16 %v872
    %v950 = vunpack.c.l.b16 %v873
    %v951 = vunpack.c.h.b16 %v873
    %v952 = vunpack.c.l.b16 %v874
    %v953 = vunpack.c.h.b16 %v874
    %v954 = vunpack.c.l.b16 %v875
    %v955 = vunpack.c.h.b16 %v875
    %v956 = vunpack.c.l.b16 %v876
    %v957 = vunpack.c.h.b16 %v876
    %v958 = vunpack.c.l.b16 %v877
    %v959 = vunpack.c.h.b16 %v877
    %v960 = vunpack.c.l.b16 %v878
    %v961 = vunpack.c.h.b16 %v878
    %v962 = vunpack.c.l.b16 %v879
    %v963 = vunpack.c.h.b16 %v879
    %v964 = vunpack.c.l.b16 %v880
    %v965 = vunpack.c.h.b16 %v880
    %v966 = vunpack.c.l.b16 %v881
    %v967 = vunpack.c.h.b16 %v881
    %v968 = vunpack.c.l.b16 %v882
    %v969 = vunpack.c.h.b16 %v882
    %v970 = vunpack.c.l.b16 %v883
    %v971 = vunpack.c.h.b16 %v883
    %v972 = vunpack.c.l.b16 %v884
    %v973 = vunpack.c.h.b16 %v884
    %v974 = vunpack.c.l.b16 %v885
    %v975 = vunpack.c.h.b16 %v885
    %v976 = vunpack.c.l.b16 %v886
    %v977 = vunpack.c.h.b16 %v886
    %v978 = vunpack.c.l.b16 %v887
    %v979 = vunpack.c.h.b16 %v887
    %v980 = vunpack.c.l.b16 %v888
    %v981 = vunpack.c.h.b16 %v888
    %v982 = vunpack.c.l.b16 %v889
    %v983 = vunpack.c.h.b16 %v889
    %v984 = vunpack.c.l.b16 %v890
    %v985 = vunpack.c.h.b16 %v890
    %v986 = vunpack.c.l.b16 %v891
    %v987 = vunpack.c.h.b16 %v891
    %v988 = vunpack.c.l.b16 %v892
    %v989 = vunpack.c.h.b16 %v892
    %v990 = vunpack.c.l.b16 %v893
    %v991 = vunpack.c.h.b16 %v893
    %v992 = vunpack.c.l.b16 %v894
    %v993 = vunpack.c.h.b16 %v894
    %v994 = vunpack.c.l.b16 %v895
    %v995 = vunpack.c.h.b16 %v895
    %v996 = vunpack.c.l.b16 %v896
    %v997 = vunpack.c.h.b16 %v896
    %v998 = vunpack.c.l.b16 %v897
    %v999 = vunpack.c.h.b16 %v897
    %v1000 = vunpack.c.l.b16 %v898
    %v1001 = vunpack.c.h.b16 %v898
    %v1002 = vunpack.c.l.b16 %v899
    %v1003 = vunpack.c.h.b16 %v899
    %v1004 = vunpack.c.l.b16 %v900
    %v1005 = vunpack.c.h.b16 %v900
    %v1006 = vunpack.c.l.b16 %v901
    %v1007 = vunpack.c.h.b16 %v901
    %v1008 = vunpack.c.l.b16 %v902
    %v1009 = vunpack.c.h.b16 %v902
    %v1010 = vunpack.c.l.b16 %v903
    %v1011 = vunpack.c.h.b16 %v903
    %v1012 = vpack.c.b16 %v950, %v948
    %v1013 = vpack.c.b16 %v951, %v949
    %v1014 = vpack.c.b16 %v954, %v952
    %v1015 = vpack.c.b16 %v955, %v953
    %v1016 = vpack.c.b16 %v958, %v956
    %v1017 = vpack.c.b16 %v959, %v957
    %v1018 = vpack.c.b16 %v962, %v960
    %v1019 = vpack.c.b16 %v963, %v961
    %v1020 = vpack.c.b16 %v966, %v964
    %v1021 = vpack.c.b16 %v967, %v965
    %v1022 = vpack.c.b16 %v970, %v968
    %v1023 = vpack.c.b16 %v971, %v969
    %v1024 = vpack.c.b16 %v974, %v972
    %v1025 = vpack.c.b16 %v975, %v973
    %v1026 = vpack.c.b16 %v978, %v976
    %v1027 = vpack.c.b16 %v979, %v977
    %v1028 = vpack.c.b16 %v982, %v980
    %v1029 = vpack.c.b16 %v983, %v981
    %v1030 = vpack.c.b16 %v986, %v984
    %v1031 = vpack.c.b16 %v987, %v985
    %v1032 = vpack.c.b16 %v990, %v988
    %v1033 = vpack.c.b16 %v991, %v989
    %v1034 = vpack.c.b16 %v994, %v992
    %v1035 = vpack.c.b16 %v995, %v993
    %v1036 = vpack.c.b16 %v998, %v996
    %v1037 = vpack.c.b16 %v999, %v997
    %v1038 = vpack.c.b16 %v1002, %v1000
    %v1039 = vpack.c.b16 %v1003, %v1001
    %v1040 = vpack.c.b16 %v1006, %v1004
    %v1041 = vpack.c.b16 %v1007, %v1005
    %v1042 = vpack.c.b16 %v1010, %v1008
    %v1043 = vpack.c.b16 %v1011, %v1009
    %1076 = vmatprep.subr.bf16.mxu0 %v1013
    %1077 = vmatpush1.bf16.msra.mxu0 %v1012
    %1078 = vmatprep.subr.bf16.mxu0 %v1015
    %1079 = vmatpush1.bf16.msra.mxu0 %v1014
    %1080 = vmatprep.subr.bf16.mxu0 %v1017
    %1081 = vmatpush1.bf16.msra.mxu0 %v1016
    %1082 = vmatprep.subr.bf16.mxu0 %v1019
    %1083 = vmatpush1.bf16.msra.mxu0 %v1018
    %1084 = vmatprep.subr.bf16.mxu0 %v1021
    %1085 = vmatpush1.bf16.msra.mxu0 %v1020
    %1086 = vmatprep.subr.bf16.mxu0 %v1023
    %1087 = vmatpush1.bf16.msra.mxu0 %v1022
    %1088 = vmatprep.subr.bf16.mxu0 %v1025
    %1089 = vmatpush1.bf16.msra.mxu0 %v1024
    %1090 = vmatprep.subr.bf16.mxu0 %v1027
    %1091 = vmatpush1.bf16.msra.mxu0 %v1026
    %1092 = vmatprep.subr.bf16.mxu0 %v1029
    %1093 = vmatpush1.bf16.msra.mxu0 %v1028
    %1094 = vmatprep.subr.bf16.mxu0 %v1031
    %1095 = vmatpush1.bf16.msra.mxu0 %v1030
    %1096 = vmatprep.subr.bf16.mxu0 %v1033
    %1097 = vmatpush1.bf16.msra.mxu0 %v1032
    %1098 = vmatprep.subr.bf16.mxu0 %v1035
    %1099 = vmatpush1.bf16.msra.mxu0 %v1034
    %1100 = vmatprep.subr.bf16.mxu0 %v1037
    %1101 = vmatpush1.bf16.msra.mxu0 %v1036
    %1102 = vmatprep.subr.bf16.mxu0 %v1039
    %1103 = vmatpush1.bf16.msra.mxu0 %v1038
    %1104 = vmatprep.subr.bf16.mxu0 %v1041
    %1105 = vmatpush1.bf16.msra.mxu0 %v1040
    %1106 = vmatprep.subr.bf16.mxu0 %v1043
    %1107 = vmatpush1.bf16.msra.mxu0 %v1042
    %1108 = vmatprep.mubr.bf16.mxu0 %v871
    %1109 = vmatmul.mubr.bf16.gmra.mrb[0].mxu0 %v870
    %v1110 = vpop.f32.mrb[0].mxu0
    %v1111 = vadd.f32 %v909, %v1110
    %v1112 = vpop.f32.mrb[0].mxu0
    %v1113 = vadd.f32 %v913, %v1112
    %v1114 = vpop.f32.mrb[0].mxu0
    %v1115 = vadd.f32 %v909, %v1114
    %v1116 = vpop.f32.mrb[0].mxu0
    %v1117 = vadd.f32 %v913, %v1116
    %1118 = vdwg.mxu0
    %v1119 = vmax.f32 %v1111, 0.0
    %v1120 = vmax.f32 %v1113, 0.0
    %v1121 = vmax.f32 %v1115, 0.0
    %v1122 = vmax.f32 %v1117, 0.0
    %v1123 = vpack.c.bf16 %v1121, %v1119
    %v1124 = vpack.c.bf16 %v1122, %v1120
    %v1125 = vld [vmem:[%s5] sm:$0xf]
    %v1126 = vld [vmem:[%s5 + $0x4] sm:$0xf]
    %v1127 = vld [vmem:[%s5 + $0x8] sm:$0xf]
    %v1128 = vld [vmem:[%s5 + $0xc] sm:$0xf]
    %v1129 = vld [vmem:[%s5 + $0x10] sm:$0xf]
    %v1130 = vld [vmem:[%s5 + $0x14] sm:$0xf]
    %v1131 = vld [vmem:[%s5 + $0x18] sm:$0xf]
    %v1132 = vld [vmem:[%s5 + $0x1c] sm:$0xf]
    %v1133 = vld [vmem:[%s5 + $0x20] sm:$0xf]
    %v1134 = vld [vmem:[%s5 + $0x24] sm:$0xf]
    %v1135 = vld [vmem:[%s5 + $0x28] sm:$0xf]
    %v1136 = vld [vmem:[%s5 + $0x2c] sm:$0xf]
    %v1137 = vld [vmem:[%s5 + $0x30] sm:$0xf]
    %v1138 = vld [vmem:[%s5 + $0x34] sm:$0xf]
    %v1139 = vld [vmem:[%s5 + $0x38] sm:$0xf]
    %v1140 = vld [vmem:[%s5 + $0x3c] sm:$0xf]
    %v1141 = vld [vmem:[%s5 + $0x40] sm:$0xf]
    %v1142 = vld [vmem:[%s5 + $0x44] sm:$0xf]
    %v1143 = vld [vmem:[%s5 + $0x48] sm:$0xf]
    %v1144 = vld [vmem:[%s5 + $0x4c] sm:$0xf]
    %v1145 = vld [vmem:[%s5 + $0x50] sm:$0xf]
    %v1146 = vld [vmem:[%s5 + $0x54] sm:$0xf]
    %v1147 = vld [vmem:[%s5 + $0x58] sm:$0xf]
    %v1148 = vld [vmem:[%s5 + $0x5c] sm:$0xf]
    %v1149 = vld [vmem:[%s5 + $0x60] sm:$0xf]
    %v1150 = vld [vmem:[%s5 + $0x64] sm:$0xf]
    %v1151 = vld [vmem:[%s5 + $0x68] sm:$0xf]
    %v1152 = vld [vmem:[%s5 + $0x6c] sm:$0xf]
    %v1153 = vld [vmem:[%s5 + $0x70] sm:$0xf]
    %v1154 = vld [vmem:[%s5 + $0x74] sm:$0xf]
    %v1155 = vld [vmem:[%s5 + $0x78] sm:$0xf]
    %v1156 = vld [vmem:[%s5 + $0x7c] sm:$0xf]
    %v1157 = vld [vmem:[%s6] sm:$0x1]
    %v1159 = vlaneseq
    %v1160 = vshrl.u32 %v1159, 7
    %v1161 = vsub.s32 0, %v1160
    %v1162 = vrot.slane %v1157, %v1161
    %v1196 = vunpack.c.l.b16 %v1125
    %v1197 = vunpack.c.l.b16 %v1126
    %v1198 = vunpack.c.l.b16 %v1127
    %v1199 = vunpack.c.l.b16 %v1128
    %v1200 = vunpack.c.l.b16 %v1129
    %v1201 = vunpack.c.l.b16 %v1130
    %v1202 = vunpack.c.l.b16 %v1131
    %v1203 = vunpack.c.l.b16 %v1132
    %v1204 = vunpack.c.l.b16 %v1133
    %v1205 = vunpack.c.l.b16 %v1134
    %v1206 = vunpack.c.l.b16 %v1135
    %v1207 = vunpack.c.l.b16 %v1136
    %v1208 = vunpack.c.l.b16 %v1137
    %v1209 = vunpack.c.l.b16 %v1138
    %v1210 = vunpack.c.l.b16 %v1139
    %v1211 = vunpack.c.l.b16 %v1140
    %v1212 = vunpack.c.l.b16 %v1141
    %v1213 = vunpack.c.l.b16 %v1142
    %v1214 = vunpack.c.l.b16 %v1143
    %v1215 = vunpack.c.l.b16 %v1144
    %v1216 = vunpack.c.l.b16 %v1145
    %v1217 = vunpack.c.l.b16 %v1146
    %v1218 = vunpack.c.l.b16 %v1147
    %v1219 = vunpack.c.l.b16 %v1148
    %v1220 = vunpack.c.l.b16 %v1149
    %v1221 = vunpack.c.l.b16 %v1150
    %v1222 = vunpack.c.l.b16 %v1151
    %v1223 = vunpack.c.l.b16 %v1152
    %v1224 = vunpack.c.l.b16 %v1153
    %v1225 = vunpack.c.l.b16 %v1154
    %v1226 = vunpack.c.l.b16 %v1155
    %v1227 = vunpack.c.l.b16 %v1156
    %v1228 = vpack.c.b16 %v1197, %v1196
    %v1229 = vpack.c.b16 %v1199, %v1198
    %v1230 = vpack.c.b16 %v1201, %v1200
    %v1231 = vpack.c.b16 %v1203, %v1202
    %v1232 = vpack.c.b16 %v1205, %v1204
    %v1233 = vpack.c.b16 %v1207, %v1206
    %v1234 = vpack.c.b16 %v1209, %v1208
    %v1235 = vpack.c.b16 %v1211, %v1210
    %v1236 = vpack.c.b16 %v1213, %v1212
    %v1237 = vpack.c.b16 %v1215, %v1214
    %v1238 = vpack.c.b16 %v1217, %v1216
    %v1239 = vpack.c.b16 %v1219, %v1218
    %v1240 = vpack.c.b16 %v1221, %v1220
    %v1241 = vpack.c.b16 %v1223, %v1222
    %v1242 = vpack.c.b16 %v1225, %v1224
    %v1243 = vpack.c.b16 %v1227, %v1226
    %1260 = vmatprep.subr.bf16.mxu0 0
    %1261 = vmatpush1.bf16.msra.mxu0 %v1228
    %1262 = vmatprep.subr.bf16.mxu0 0
    %1263 = vmatpush1.bf16.msra.mxu0 %v1229
    %1264 = vmatprep.subr.bf16.mxu0 0
    %1265 = vmatpush1.bf16.msra.mxu0 %v1230
    %1266 = vmatprep.subr.bf16.mxu0 0
    %1267 = vmatpush1.bf16.msra.mxu0 %v1231
    %1268 = vmatprep.subr.bf16.mxu0 0
    %1269 = vmatpush1.bf16.msra.mxu0 %v1232
    %1270 = vmatprep.subr.bf16.mxu0 0
    %1271 = vmatpush1.bf16.msra.mxu0 %v1233
    %1272 = vmatprep.subr.bf16.mxu0 0
    %1273 = vmatpush1.bf16.msra.mxu0 %v1234
    %1274 = vmatprep.subr.bf16.mxu0 0
    %1275 = vmatpush1.bf16.msra.mxu0 %v1235
    %1276 = vmatprep.subr.bf16.mxu0 0
    %1277 = vmatpush1.bf16.msra.mxu0 %v1236
    %1278 = vmatprep.subr.bf16.mxu0 0
    %1279 = vmatpush1.bf16.msra.mxu0 %v1237
    %1280 = vmatprep.subr.bf16.mxu0 0
    %1281 = vmatpush1.bf16.msra.mxu0 %v1238
    %1282 = vmatprep.subr.bf16.mxu0 0
    %1283 = vmatpush1.bf16.msra.mxu0 %v1239
    %1284 = vmatprep.subr.bf16.mxu0 0
    %1285 = vmatpush1.bf16.msra.mxu0 %v1240
    %1286 = vmatprep.subr.bf16.mxu0 0
    %1287 = vmatpush1.bf16.msra.mxu0 %v1241
    %1288 = vmatprep.subr.bf16.mxu0 0
    %1289 = vmatpush1.bf16.msra.mxu0 %v1242
    %1290 = vmatprep.subr.bf16.mxu0 0
    %1291 = vmatpush1.bf16.msra.mxu0 %v1243
    %1292 = vmatprep.mubr.bf16.mxu0 %v1124
    %1293 = vmatmul.mubr.bf16.gmra.mrb[0].mxu0 %v1123
    %v1294 = vpop.f32.mrb[0].mxu0
    %v1295 = vadd.f32 %v1162, %v1294
    %v1296 = vpop.f32.mrb[0].mxu0
    %v1297 = vpop.f32.mrb[0].mxu0
    %v1298 = vadd.f32 %v1162, %v1297
    %v1299 = vpop.f32.mrb[0].mxu0
    %1300 = vdwg.mxu0
    %v1301 = vmax.f32 %v1295, 0.0
    %v1302 = vmax.f32 %v1298, 0.0
    %v1303 = vpack.c.bf16 %v1302, %v1301
    %v1304 = vld [vmem:[%s7] sm:$0xf]
    %v1305 = vld [vmem:[%s7 + $0x4] sm:$0xf]
    %v1306 = vld [vmem:[%s7 + $0x8] sm:$0xf]
    %v1307 = vld [vmem:[%s7 + $0xc] sm:$0xf]
    %v1308 = vld [vmem:[%s7 + $0x10] sm:$0xf]
    %v1309 = vld [vmem:[%s7 + $0x14] sm:$0xf]
    %v1310 = vld [vmem:[%s7 + $0x18] sm:$0xf]
    %v1311 = vld [vmem:[%s7 + $0x1c] sm:$0xf]
    %v1312 = vld [vmem:[%s7 + $0x20] sm:$0xf]
    %v1313 = vld [vmem:[%s7 + $0x24] sm:$0xf]
    %v1314 = vld [vmem:[%s7 + $0x28] sm:$0xf]
    %v1315 = vld [vmem:[%s7 + $0x2c] sm:$0xf]
    %v1316 = vld [vmem:[%s7 + $0x30] sm:$0xf]
    %v1317 = vld [vmem:[%s7 + $0x34] sm:$0xf]
    %v1318 = vld [vmem:[%s7 + $0x38] sm:$0xf]
    %v1319 = vld [vmem:[%s7 + $0x3c] sm:$0xf]
    %v1320 = vld [vmem:[%s8] sm:$0x1]
    %v1322 = vlaneseq
    %v1323 = vshrl.u32 %v1322, 7
    %v1324 = vsub.s32 0, %v1323
    %v1325 = vrot.slane %v1320, %v1324
    %v1343 = vunpack.c.l.b16 %v1304
    %v1344 = vunpack.c.l.b16 %v1305
    %v1345 = vunpack.c.l.b16 %v1306
    %v1346 = vunpack.c.l.b16 %v1307
    %v1347 = vunpack.c.l.b16 %v1308
    %v1348 = vunpack.c.l.b16 %v1309
    %v1349 = vunpack.c.l.b16 %v1310
    %v1350 = vunpack.c.l.b16 %v1311
    %v1351 = vunpack.c.l.b16 %v1312
    %v1352 = vunpack.c.l.b16 %v1313
    %v1353 = vunpack.c.l.b16 %v1314
    %v1354 = vunpack.c.l.b16 %v1315
    %v1355 = vunpack.c.l.b16 %v1316
    %v1356 = vunpack.c.l.b16 %v1317
    %v1357 = vunpack.c.l.b16 %v1318
    %v1358 = vunpack.c.l.b16 %v1319
    %v1359 = vpack.c.b16 %v1344, %v1343
    %v1360 = vpack.c.b16 %v1346, %v1345
    %v1361 = vpack.c.b16 %v1348, %v1347
    %v1362 = vpack.c.b16 %v1350, %v1349
    %v1363 = vpack.c.b16 %v1352, %v1351
    %v1364 = vpack.c.b16 %v1354, %v1353
    %v1365 = vpack.c.b16 %v1356, %v1355
    %v1366 = vpack.c.b16 %v1358, %v1357
    %1375 = vmatprep.subr.bf16.mxu0 0
    %1376 = vmatpush1.bf16.msra.mxu0 %v1359
    %1377 = vmatprep.subr.bf16.mxu0 0
    %1378 = vmatpush1.bf16.msra.mxu0 %v1360
    %1379 = vmatprep.subr.bf16.mxu0 0
    %1380 = vmatpush1.bf16.msra.mxu0 %v1361
    %1381 = vmatprep.subr.bf16.mxu0 0
    %1382 = vmatpush1.bf16.msra.mxu0 %v1362
    %1383 = vmatprep.subr.bf16.mxu0 0
    %1384 = vmatpush1.bf16.msra.mxu0 %v1363
    %1385 = vmatprep.subr.bf16.mxu0 0
    %1386 = vmatpush1.bf16.msra.mxu0 %v1364
    %1387 = vmatprep.subr.bf16.mxu0 0
    %1388 = vmatpush1.bf16.msra.mxu0 %v1365
    %1389 = vmatprep.subr.bf16.mxu0 0
    %1390 = vmatpush1.bf16.msra.mxu0 %v1366
    %1391 = vmatprep.subr.bf16.mxu0 0
    %1392 = vmatpush1.bf16.msra.mxu0 0
    %1393 = vmatprep.subr.bf16.mxu0 0
    %1394 = vmatpush1.bf16.msra.mxu0 0
    %1395 = vmatprep.subr.bf16.mxu0 0
    %1396 = vmatpush1.bf16.msra.mxu0 0
    %1397 = vmatprep.subr.bf16.mxu0 0
    %1398 = vmatpush1.bf16.msra.mxu0 0
    %1399 = vmatprep.subr.bf16.mxu0 0
    %1400 = vmatpush1.bf16.msra.mxu0 0
    %1401 = vmatprep.subr.bf16.mxu0 0
    %1402 = vmatpush1.bf16.msra.mxu0 0
    %1403 = vmatprep.subr.bf16.mxu0 0
    %1404 = vmatpush1.bf16.msra.mxu0 0
    %1405 = vmatprep.subr.bf16.mxu0 0
    %1406 = vmatpush1.bf16.msra.mxu0 0
    %1407 = vmatprep.mubr.bf16.mxu0 0
    %1408 = vmatmul.mubr.bf16.gmra.mrb[0].mxu0 %v1303
    %v1409 = vpop.f32.mrb[0].mxu0
    %v1410 = vadd.f32 %v1325, %v1409
    %v1411 = vpop.f32.mrb[0].mxu0
    %v1412 = vpop.f32.mrb[0].mxu0
    %v1413 = vadd.f32 %v1325, %v1412
    %v1414 = vpop.f32.mrb[0].mxu0
    %1415 = vdwg.mxu0
    %1416 = vmax.xlane.f32.xlu0 %v1410
    %v1417 = vpop.xlane.xlu0 %1416
    %1418 = vmax.xlane.f32.xlu0 %v1413
    %v1419 = vpop.xlane.xlu0 %1418
    %v1420 = vsub.f32 %v1410, %v1417
    %v1421 = vsub.f32 %v1413, %v1419
    %v1422 = vmul.f32 %v1420, 1.442695
    %v1423 = vpow.pop %v1422
    %v1424 = vmul.f32 %v1421, 1.442695
    %v1425 = vpow.pop %v1424
    %1426 = vadd.xlane.f32.xlu0 %v1423
    %v1427 = vpop.xlane.xlu0 %1426
    %1428 = vadd.xlane.f32.xlu0 %v1425
    %v1429 = vpop.xlane.xlu0 %1428
    %v1430 = vlog2.pop %v1427
    %v1431 = vmul.f32 %v1430, 0.6931472
    %v1432 = vlog2.pop %v1429
    %v1433 = vmul.f32 %v1432, 0.6931472
    %v1434 = vsub.f32 %v1420, %v1431
    %v1435 = vsub.f32 %v1421, %v1433
    %vm1436 = vcmask 80896
    %1437 = vst.msk [vmem:[%s9] sm:$0xff] %vm1436, %v1434
    %1438 = vst.msk [vmem:[%s9 + $0x8] sm:$0xff] %vm1436, %v1435
    // Predicated region
    $region42: #{net_forward.1} parent=1 // pred_check
      _
    $region43: #{net_forward.1} parent=1 // pred_check_branch
      %1440 = sbr.rel (0) target = $region45
    $region44: #{net_forward.1} parent=1 // pred_region
      _
    $region45: #{net_forward.1} parent=1 // pred_fallthru
      _
    // Predicated region
    $region46: #{net_forward.1} parent=1 // pred_check
      _
    $region47: #{net_forward.1} parent=1 // pred_check_branch
      %1442 = sbr.rel (0) target = $region49
    $region48: #{net_forward.1} parent=1 // pred_region
      _
    $region49: #{net_forward.1} parent=1 // pred_fallthru
      _
    %1443 = vsyncpa [#allocation3], 1

</llo_original>
